<compile_context>
chip_gen: v7x
topology: tpu7x:2x2x1
jax: 0.10.0
libtpu: 0.0.40
codegen_flags: <defaults>
</compile_context>

<pallas_src>
import functools

import jax
import jax.numpy as jnp
from jax.experimental import pallas as pl
from jax.experimental.pallas import tpu as pltpu


# --------------------------------------------------------------------------
# Kernel A: global average pool (tiled over HW) + 1x1-conv MLP -> scale s
# --------------------------------------------------------------------------
def _pool_mlp_kernel(x_ref, w1t_ref, b1_ref, w2t_ref, b2_ref, s_ref, acc_ref,
                     *, inv_hw):
    t = pl.program_id(1)

    @pl.when(t == 0)
    def _():
        acc_ref[...] = jnp.zeros_like(acc_ref)

    # f32-accumulated partial sum over this HW tile (no f32 copy of the tile;
    # zero-padding of HW does not change the sum).
    acc_ref[...] += jnp.sum(x_ref[...], axis=-1, keepdims=True,
                            dtype=jnp.float32)

    @pl.when(t == pl.num_programs(1) - 1)
    def _():
        mean = acc_ref[...][:, :, 0] * inv_hw                    # (Bt, C) f32
        w1t = w1t_ref[...].astype(jnp.float32)                   # (C, Cr)
        b1 = b1_ref[...].astype(jnp.float32)                     # (1, Cr)
        w2t = w2t_ref[...].astype(jnp.float32)                   # (Cr, C)
        b2 = b2_ref[...].astype(jnp.float32)                     # (1, C)
        h = jnp.dot(mean, w1t, preferred_element_type=jnp.float32) + b1
        h = jnp.maximum(h, 0.0)                                  # ReLU
        s = jnp.dot(h, w2t, preferred_element_type=jnp.float32) + b2
        s = jax.nn.sigmoid(s)                                    # (Bt, C)
        s_ref[...] = s[:, :, None]                               # (Bt, C, 1)


# --------------------------------------------------------------------------
# Kernel B: elementwise channel-wise rescale, lane-tiled, native dtype
# --------------------------------------------------------------------------
def _scale_kernel(s_ref, x_ref, o_ref):
    s = s_ref[...].astype(o_ref.dtype)                           # (Bt, C, 1)
    o_ref[...] = (x_ref[...] * s).astype(o_ref.dtype)


# --------------------------------------------------------------------------
# Wrapper
# --------------------------------------------------------------------------
def ca_layer(x_nchw, w1, b1, w2, b2, *, target_block_bytes=4 << 20):
    """Channel-attention forward.

    x_nchw: (N, C, H, W); w1: (C//8, C); b1: (C//8,); w2: (C, C//8); b2: (C,)
    """
    N, C, H, W = x_nchw.shape
    Cr = w1.shape[0]
    HW = H * W
    itemsize = x_nchw.dtype.itemsize

    # Lane tile: multiple of 128, sized so one (1, C, tile) block ~ budget.
    max_tile = max(128, (target_block_bytes // (C * itemsize)) // 128 * 128)
    hw128 = ((HW + 127) // 128) * 128
    tile_hw = min(max_tile, hw128)
    HWp = ((HW + tile_hw - 1) // tile_hw) * tile_hw   # pad so tiles divide evenly
    T = HWp // tile_hw

    # Block multiple batches per step when slabs are tiny, but keep >=2
    # parallel grid steps when possible (v7x has 2 TensorCores).
    Bt = 1
    if T == 1:
        for d in range(N, 0, -1):
            if (N % d == 0
                    and d * C * HWp * itemsize <= target_block_bytes
                    and (N // d >= 2 or d == 1)):
                Bt = d
                break
    NB = N // Bt

    x = x_nchw.reshape(N, C, HW)
    if HWp != HW:
        x = jnp.pad(x, ((0, 0), (0, 0), (0, HWp - HW)))

    # Pre-transpose weights / reshape biases so the in-kernel MLP is two
    # small row-major matmuls with no in-kernel weight transposes.
    w1t = w1.T                       # (C, Cr)
    w2t = w2.T                       # (Cr, C)
    b1r = b1.reshape(1, Cr)
    b2r = b2.reshape(1, C)

    vmem_limit = 32 * 1024 * 1024

    # ---- pass 1: pooled mean + MLP -> per-channel scale (N, C, 1), f32 ----
    s_scale = pl.pallas_call(
        functools.partial(_pool_mlp_kernel, inv_hw=1.0 / HW),
        out_shape=jax.ShapeDtypeStruct((N, C, 1), jnp.float32),
        grid_spec=pltpu.PrefetchScalarGridSpec(
            num_scalar_prefetch=0,
            grid=(NB, T),
            in_specs=[
                pl.BlockSpec((Bt, C, tile_hw), lambda b, t: (b, 0, t)),
                pl.BlockSpec((C, Cr), lambda b, t: (0, 0)),
                pl.BlockSpec((1, Cr), lambda b, t: (0, 0)),
                pl.BlockSpec((Cr, C), lambda b, t: (0, 0)),
                pl.BlockSpec((1, C), lambda b, t: (0, 0)),
            ],
            out_specs=pl.BlockSpec((Bt, C, 1), lambda b, t: (b, 0, 0)),
            scratch_shapes=[pltpu.VMEM((Bt, C, 1), jnp.float32)],
        ),
        compiler_params=pltpu.CompilerParams(
            dimension_semantics=("parallel", "arbitrary"),
            vmem_limit_bytes=vmem_limit),
        cost_estimate=pl.CostEstimate(
            flops=N * C * HWp + 4 * N * C * Cr,
            transcendentals=N * C,
            bytes_accessed=N * C * HWp * itemsize + N * C * 4),
    )(x, w1t, b1r, w2t, b2r)

    # ---- pass 2: lane-tiled elementwise rescale in native dtype ----------
    out = pl.pallas_call(
        _scale_kernel,
        out_shape=jax.ShapeDtypeStruct((N, C, HWp), x_nchw.dtype),
        grid_spec=pltpu.PrefetchScalarGridSpec(
            num_scalar_prefetch=0,
            grid=(NB, T),
            in_specs=[
                pl.BlockSpec((Bt, C, 1), lambda b, t: (b, 0, 0)),
                pl.BlockSpec((Bt, C, tile_hw), lambda b, t: (b, 0, t)),
            ],
            out_specs=pl.BlockSpec((Bt, C, tile_hw), lambda b, t: (b, 0, t)),
        ),
        compiler_params=pltpu.CompilerParams(
            dimension_semantics=("parallel", "parallel"),
            vmem_limit_bytes=vmem_limit),
        cost_estimate=pl.CostEstimate(
            flops=N * C * HWp,
            transcendentals=0,
            bytes_accessed=2 * N * C * HWp * itemsize),
    )(s_scale, x)

    if HWp != HW:
        out = out[:, :, :HW]
    return out.reshape(N, C, H, W)


# --------------------------------------------------------------------------
# Plain-JAX reference mirroring the PyTorch module semantics.
# --------------------------------------------------------------------------
def _reference(x, w1, b1, w2, b2):
    y = jnp.mean(x, axis=(2, 3))                               # (N, C)
    h = jnp.maximum(y @ w1.T + b1, 0.0)                        # (N, C//8)
    s = jax.nn.sigmoid(h @ w2.T + b2)                          # (N, C)
    return x * s[:, :, None, None]


if __name__ == "__main__":
    key = jax.random.PRNGKey(0)
    N, C, H, W = 2, 32, 16, 16          # channel must be >= 8 (Conv C -> C//8)
    Cr = C // 8

    k_x, k_w1, k_b1, k_w2, k_b2 = jax.random.split(key, 5)
    x = jax.random.normal(k_x, (N, C, H, W), dtype=jnp.float32)
    w1 = jax.random.normal(k_w1, (Cr, C), dtype=jnp.float32) * 0.1
    b1 = jax.random.normal(k_b1, (Cr,), dtype=jnp.float32) * 0.1
    w2 = jax.random.normal(k_w2, (C, Cr), dtype=jnp.float32) * 0.1
    b2 = jax.random.normal(k_b2, (C,), dtype=jnp.float32) * 0.1

    out = ca_layer(x, w1, b1, w2, b2)
    out = jax.block_until_ready(out)

    ref = _reference(x, w1, b1, w2, b2)
    assert out.shape == (N, C, H, W)
    assert jnp.allclose(out, ref, atol=1e-5, rtol=1e-5), "mismatch vs reference"

    print("KERNEL_OK")
</pallas_src>

<mosaic_0001>
module attributes {stable_mosaic.version = 11 : i64} {
  func.func @_pool_mlp_kernel(%arg0: i32, %arg1: i32, %arg2: memref<1x32x256xf32, #tpu.memory_space<vmem>>, %arg3: memref<32x4xf32, #tpu.memory_space<vmem>>, %arg4: memref<1x4xf32, #tpu.memory_space<vmem>>, %arg5: memref<4x32xf32, #tpu.memory_space<vmem>>, %arg6: memref<1x32xf32, #tpu.memory_space<vmem>>, %arg7: memref<1x32x1xf32, #tpu.memory_space<vmem>>, %arg8: memref<1x32x1xf32, #tpu.memory_space<vmem>>) attributes {dimension_semantics = [#tpu.dimension_semantics<parallel>, #tpu.dimension_semantics<arbitrary>], iteration_bounds = array<i64: 2, 1>, scalar_prefetch = 0 : i64, scratch_operands = 1 : i64, tpu.core_type = #tpu.core_type<tc>, window_params = [{transform_indices = @transform_0, window_bounds = array<i64: 1, 32, 256>}, {pipeline_mode = #tpu.pipeline_mode<synchronous>, transform_indices = @transform_1, window_bounds = array<i64: 32, 4>}, {pipeline_mode = #tpu.pipeline_mode<synchronous>, transform_indices = @transform_2, window_bounds = array<i64: 1, 4>}, {pipeline_mode = #tpu.pipeline_mode<synchronous>, transform_indices = @transform_3, window_bounds = array<i64: 4, 32>}, {pipeline_mode = #tpu.pipeline_mode<synchronous>, transform_indices = @transform_4, window_bounds = array<i64: 1, 32>}, {transform_indices = @transform_5, window_bounds = array<i64: 1, 32, 1>}]} {
    %c0_i32 = arith.constant 0 : i32
    %0 = arith.cmpi eq, %arg1, %c0_i32 : i32
    %1 = arith.extui %0 : i1 to i32
    %c0_i32_0 = arith.constant 0 : i32
    %2 = arith.cmpi ne, %1, %c0_i32_0 : i32
    scf.if %2 {
      %cst_11 = arith.constant 0.000000e+00 : f32
      %12 = vector.broadcast %cst_11 : f32 to vector<1x32x1xf32>
      %c0_12 = arith.constant 0 : index
      %c0_13 = arith.constant 0 : index
      %c0_14 = arith.constant 0 : index
      %13 = vector.load %arg8[%c0_12, %c0_13, %c0_14] : memref<1x32x1xf32, #tpu.memory_space<vmem>>, vector<1x32x1xf32>
      tpu.vector_store %arg8[%c0_12, %c0_13, %c0_14], %12 {strides = array<i32>} : memref<1x32x1xf32, #tpu.memory_space<vmem>>, vector<1x32x1xf32>,
    } else {
    }
    %c0 = arith.constant 0 : index
    %c0_1 = arith.constant 0 : index
    %c0_2 = arith.constant 0 : index
    %3 = vector.load %arg8[%c0, %c0_1, %c0_2] : memref<1x32x1xf32, #tpu.memory_space<vmem>>, vector<1x32x1xf32>
    %c0_3 = arith.constant 0 : index
    %c0_4 = arith.constant 0 : index
    %c0_5 = arith.constant 0 : index
    %4 = vector.load %arg2[%c0_3, %c0_4, %c0_5] : memref<1x32x256xf32, #tpu.memory_space<vmem>>, vector<1x32x256xf32>
    %cst = arith.constant dense<0.000000e+00> : vector<1x32xf32>
    %5 = vector.multi_reduction <add>, %4, %cst [2] : vector<1x32x256xf32> to vector<1x32xf32>
    %6 = vector.shape_cast %5 : vector<1x32xf32> to vector<1x32x1xf32>
    %7 = arith.addf %3, %6 : vector<1x32x1xf32>
    %c0_6 = arith.constant 0 : index
    %c0_7 = arith.constant 0 : index
    %c0_8 = arith.constant 0 : index
    %8 = vector.load %arg8[%c0_6, %c0_7, %c0_8] : memref<1x32x1xf32, #tpu.memory_space<vmem>>, vector<1x32x1xf32>
    tpu.vector_store %arg8[%c0_6, %c0_7, %c0_8], %7 {strides = array<i32>} : memref<1x32x1xf32, #tpu.memory_space<vmem>>, vector<1x32x1xf32>,
    %c0_i32_9 = arith.constant 0 : i32
    %9 = arith.cmpi eq, %arg1, %c0_i32_9 : i32
    %10 = arith.extui %9 : i1 to i32
    %c0_i32_10 = arith.constant 0 : i32
    %11 = arith.cmpi ne, %10, %c0_i32_10 : i32
    scf.if %11 {
      %c0_11 = arith.constant 0 : index
      %c0_12 = arith.constant 0 : index
      %c0_13 = arith.constant 0 : index
      %12 = vector.load %arg8[%c0_11, %c0_12, %c0_13] : memref<1x32x1xf32, #tpu.memory_space<vmem>>, vector<1x32x1xf32>
      %13 = vector.shape_cast %12 : vector<1x32x1xf32> to vector<1x32xf32>
      %cst_14 = arith.constant 3.906250e-03 : f32
      %14 = vector.broadcast %cst_14 : f32 to vector<1x32xf32>
      %15 = arith.mulf %13, %14 : vector<1x32xf32>
      %c0_15 = arith.constant 0 : index
      %c0_16 = arith.constant 0 : index
      %16 = vector.load %arg3[%c0_15, %c0_16] : memref<32x4xf32, #tpu.memory_space<vmem>>, vector<32x4xf32>
      %c0_17 = arith.constant 0 : index
      %c0_18 = arith.constant 0 : index
      %17 = vector.load %arg4[%c0_17, %c0_18] : memref<1x4xf32, #tpu.memory_space<vmem>>, vector<1x4xf32>
      %c0_19 = arith.constant 0 : index
      %c0_20 = arith.constant 0 : index
      %18 = vector.load %arg5[%c0_19, %c0_20] : memref<4x32xf32, #tpu.memory_space<vmem>>, vector<4x32xf32>
      %c0_21 = arith.constant 0 : index
      %c0_22 = arith.constant 0 : index
      %19 = vector.load %arg6[%c0_21, %c0_22] : memref<1x32xf32, #tpu.memory_space<vmem>>, vector<1x32xf32>
      %cst_23 = arith.constant dense<0.000000e+00> : vector<1x4xf32>
      %20 = tpu.matmul %15, %16, %cst_23 {dimension_numbers = #tpu.dot_dimension_numbers<[1], [0], [0], [1], [0, 0, 1, 1], [], []>} : vector<1x32xf32>, vector<32x4xf32>, vector<1x4xf32> -> vector<1x4xf32>
      %21 = arith.addf %20, %17 : vector<1x4xf32>
      %cst_24 = arith.constant 0.000000e+00 : f32
      %22 = vector.broadcast %cst_24 : f32 to vector<1x4xf32>
      %23 = arith.maximumf %21, %22 : vector<1x4xf32>
      %cst_25 = arith.constant dense<0.000000e+00> : vector<1x32xf32>
      %24 = tpu.matmul %23, %18, %cst_25 {dimension_numbers = #tpu.dot_dimension_numbers<[1], [0], [0], [1], [0, 0, 1, 1], [], []>} : vector<1x4xf32>, vector<4x32xf32>, vector<1x32xf32> -> vector<1x32xf32>
      %25 = arith.addf %24, %19 : vector<1x32xf32>
      %26 = arith.negf %25 : vector<1x32xf32>
      %27 = math.exp %26 : vector<1x32xf32>
      %cst_26 = arith.constant 1.000000e+00 : f32
      %28 = vector.broadcast %cst_26 : f32 to vector<1x32xf32>
      %29 = arith.addf %28, %27 : vector<1x32xf32>
      %30 = arith.divf %28, %29 : vector<1x32xf32>
      %31 = vector.shape_cast %30 : vector<1x32xf32> to vector<1x32x1xf32>
      %c0_27 = arith.constant 0 : index
      %c0_28 = arith.constant 0 : index
      %c0_29 = arith.constant 0 : index
      %32 = vector.load %arg7[%c0_27, %c0_28, %c0_29] : memref<1x32x1xf32, #tpu.memory_space<vmem>>, vector<1x32x1xf32>
      tpu.vector_store %arg7[%c0_27, %c0_28, %c0_29], %31 {strides = array<i32>} : memref<1x32x1xf32, #tpu.memory_space<vmem>>, vector<1x32x1xf32>,
    } else {
    }
    return
  }
  func.func @transform_0(%arg0: i32, %arg1: i32) -> (i32, i32, i32) {
    %c0_i32 = arith.constant 0 : i32
    %c0_i32_0 = arith.constant 0 : i32
    return %arg0, %c0_i32, %arg1 : i32, i32, i32
  }
  func.func @transform_1(%arg0: i32, %arg1: i32) -> (i32, i32) {
    %c0_i32 = arith.constant 0 : i32
    %c0_i32_0 = arith.constant 0 : i32
    %c0_i32_1 = arith.constant 0 : i32
    return %c0_i32, %c0_i32_0 : i32, i32
  }
  func.func @transform_2(%arg0: i32, %arg1: i32) -> (i32, i32) {
    %c0_i32 = arith.constant 0 : i32
    %c0_i32_0 = arith.constant 0 : i32
    %c0_i32_1 = arith.constant 0 : i32
    return %c0_i32, %c0_i32_0 : i32, i32
  }
  func.func @transform_3(%arg0: i32, %arg1: i32) -> (i32, i32) {
    %c0_i32 = arith.constant 0 : i32
    %c0_i32_0 = arith.constant 0 : i32
    %c0_i32_1 = arith.constant 0 : i32
    return %c0_i32, %c0_i32_0 : i32, i32
  }
  func.func @transform_4(%arg0: i32, %arg1: i32) -> (i32, i32) {
    %c0_i32 = arith.constant 0 : i32
    %c0_i32_0 = arith.constant 0 : i32
    %c0_i32_1 = arith.constant 0 : i32
    return %c0_i32, %c0_i32_0 : i32, i32
  }
  func.func @transform_5(%arg0: i32, %arg1: i32) -> (i32, i32, i32) {
    %c0_i32 = arith.constant 0 : i32
    %c0_i32_0 = arith.constant 0 : i32
    %c0_i32_1 = arith.constant 0 : i32
    return %arg0, %c0_i32, %c0_i32_0 : i32, i32, i32
  }
}

</mosaic_0001>

<llo_original>
// kernel: tpu_custom_call.1
$region0: #{tpu_custom_call.1}
  #allocation0 [shape = 'u32[]', space=smem, size = 0x4, offset = 0x4, fixed_abs, tag = 'smem constant byte address 0x4 - core index']
  #allocation1 [shape = 'u32[144,128]{1,0:T(1,128)}', space=vmem, size = 0x12000, scoped, tag = 'internal scratch']
  #allocation2 [shape = 'f32[1,32,1]{2,1,0:T(8,128)}', space=vmem, size = 0x4000, scoped, tag = 'scratch operand']
  %s0 = inlined_call_operand.hbm [shape: f32[2,32,256], index: 0, kind: input, shape index: {}]
  %s1 = inlined_call_operand.vmem [shape: f32[32,4], index: 1, kind: input, shape index: {}]
  %s2 = inlined_call_operand.vmem [shape: f32[1,4], index: 2, kind: input, shape index: {}]
  %s3 = inlined_call_operand.vmem [shape: f32[4,32], index: 3, kind: input, shape index: {}]
  %s4 = inlined_call_operand.vmem [shape: f32[1,32], index: 4, kind: input, shape index: {}]
  %s5 = inlined_call_operand.vmem [shape: f32[2,32,1], index: 5, kind: output, shape index: {}]
  %s6 = sld [smem:[#allocation0]]
  $region65: #{tpu_custom_call.1} parent=0
    _
  %s8 = ssub.s32 1, %s6
  %s9 = scalar_select 0, %s8, %s6
  $region1: #{tpu_custom_call.1} parent=0
    #allocation3 [shape = 'u8[65536]{0}', space=vmem, size = 0x10000, scoped, tag = 'input window, operand 0']
    #allocation4 [shape = 's32[2]{0}', space=sflag, size = 0x8, scoped, tag = 'scoped memory for tpu_custom_call.1']
    %10 = vsyncpa [#allocation4], 0
    %s11 = scalar_lea.sflag [#allocation4], 1
    %12 = vsyncpa %s11, 0
    loop: start=0, step=1, limit=4
    $region2: #{tpu_custom_call.1} parent=1 // loop_pre_header
      _
    $region3: #{tpu_custom_call.1} parent=1 // loop_header
      %s14 = sphi 0, %s18
      %p15 = scmp.ge.s32.totalorder %s14, 4
      %s21 = sphi 0, %s33
      %s22 = sphi 0, %s29
      %s23 = sphi 0, %s21
      %s24 = sphi 0, %s22
      %s25 = sphi 0, %s23
      %s26 = sphi 0, %s24
      %s38 = sphi 0, %s40
      %s41 = sphi 0, %s38
      %s42 = sphi 0, %s41
      %s58 = sphi 0, %s42
      %s62 = sphi 0, %s62
      %s64 = sphi 0, %s62
      %s65 = sphi 0, %s64
      %s79 = sphi 0, %s65
      %s83 = sphi 0, %s83
      %s85 = sphi 0, %s83
      %s86 = sphi 0, %s85
      %s100 = sphi 0, %s86
      %s104 = sphi 0, %s104
      %s106 = sphi 0, %s104
      %s107 = sphi 0, %s106
      %s121 = sphi 0, %s107
      %s125 = sphi 0, %s125
      %s127 = sphi 0, %s125
      %s128 = sphi 0, %s127
      %s142 = sphi 0, %s128
      %s148 = sphi 0, %s150
      %s151 = sphi 0, %s148
      %s152 = sphi 0, %s151
      %s168 = sphi 0, %s152
    $region4: #{tpu_custom_call.1} parent=1 // loop_header_branch
      %17 = sbr.rel (%p15) target = $region8
    $region5: #{tpu_custom_call.1} parent=1 // loop_body
      %s19 = ssub.s32 %s14, 1
      %s20 = ssub.s32 %s14, 2
      %s27 = sadd.s32 1, %s22
      %p28 = scmp.ge.s32.totalorder %s27, 1
      %s29 = scalar_select %p28, 0, %s27
      %s30 = sadd.s32 1, %s21
      %s31 = scalar_select %p28, %s30, %s21
      %p32 = scmp.ge.s32.totalorder %s31, 2
      %s33 = scalar_select %p32, 0, %s31
      %s34 = ssub.s32 %s21, %s33
      %s35 = ssub.s32 %s22, %s29
      %s36 = sor.u32 %s34, %s35
      %p37 = scmp.eq.s32.totalorder %s36, 0
      %s39 = sadd.s32 %s38, 1
      %s40 = scalar_select %p37, %s38, %s39
      %p43 = pneg %p37
      %p44 = scmp.eq.s32.totalorder %s14, 1
      %p45 = por %p43, %p44
      %p46 = scmp.ne.s32.totalorder %s38, %s41
      %p47 = scmp.eq.s32.totalorder %s14, 0
      %p48 = por %p46, %p47
      %p49 = scmp.ne.s32.totalorder %s38, %s41
      %p50 = scmp.eq.s32.totalorder %s19, 1
      %p51 = por %p49, %p50
      %p52 = scmp.ne.s32.totalorder %s41, %s42
      %p53 = scmp.eq.s32.totalorder %s19, 0
      %p54 = por %p52, %p53
      %p55 = scmp.ne.s32.totalorder %s41, %s42
      %p56 = scmp.eq.s32.totalorder %s20, 1
      %p57 = por %p55, %p56
      %p59 = scmp.ne.s32.totalorder %s42, %s58
      %p60 = scmp.eq.s32.totalorder %s20, 0
      %p61 = por %p59, %p60
      %s63 = sadd.s32 %s62, 1
      %p66 = scmp.eq.s32.totalorder %s14, 1
      %p67 = scmp.ne.s32.totalorder %s62, %s64
      %p68 = scmp.eq.s32.totalorder %s14, 0
      %p69 = por %p67, %p68
      %p70 = scmp.ne.s32.totalorder %s62, %s64
      %p71 = scmp.eq.s32.totalorder %s19, 1
      %p72 = por %p70, %p71
      %p73 = scmp.ne.s32.totalorder %s64, %s65
      %p74 = scmp.eq.s32.totalorder %s19, 0
      %p75 = por %p73, %p74
      %p76 = scmp.ne.s32.totalorder %s64, %s65
      %p77 = scmp.eq.s32.totalorder %s20, 1
      %p78 = por %p76, %p77
      %p80 = scmp.ne.s32.totalorder %s65, %s79
      %p81 = scmp.eq.s32.totalorder %s20, 0
      %p82 = por %p80, %p81
      %s84 = sadd.s32 %s83, 1
      %p87 = scmp.eq.s32.totalorder %s14, 1
      %p88 = scmp.ne.s32.totalorder %s83, %s85
      %p89 = scmp.eq.s32.totalorder %s14, 0
      %p90 = por %p88, %p89
      %p91 = scmp.ne.s32.totalorder %s83, %s85
      %p92 = scmp.eq.s32.totalorder %s19, 1
      %p93 = por %p91, %p92
      %p94 = scmp.ne.s32.totalorder %s85, %s86
      %p95 = scmp.eq.s32.totalorder %s19, 0
      %p96 = por %p94, %p95
      %p97 = scmp.ne.s32.totalorder %s85, %s86
      %p98 = scmp.eq.s32.totalorder %s20, 1
      %p99 = por %p97, %p98
      %p101 = scmp.ne.s32.totalorder %s86, %s100
      %p102 = scmp.eq.s32.totalorder %s20, 0
      %p103 = por %p101, %p102
      %s105 = sadd.s32 %s104, 1
      %p108 = scmp.eq.s32.totalorder %s14, 1
      %p109 = scmp.ne.s32.totalorder %s104, %s106
      %p110 = scmp.eq.s32.totalorder %s14, 0
      %p111 = por %p109, %p110
      %p112 = scmp.ne.s32.totalorder %s104, %s106
      %p113 = scmp.eq.s32.totalorder %s19, 1
      %p114 = por %p112, %p113
      %p115 = scmp.ne.s32.totalorder %s106, %s107
      %p116 = scmp.eq.s32.totalorder %s19, 0
      %p117 = por %p115, %p116
      %p118 = scmp.ne.s32.totalorder %s106, %s107
      %p119 = scmp.eq.s32.totalorder %s20, 1
      %p120 = por %p118, %p119
      %p122 = scmp.ne.s32.totalorder %s107, %s121
      %p123 = scmp.eq.s32.totalorder %s20, 0
      %p124 = por %p122, %p123
      %s126 = sadd.s32 %s125, 1
      %p129 = scmp.eq.s32.totalorder %s14, 1
      %p130 = scmp.ne.s32.totalorder %s125, %s127
      %p131 = scmp.eq.s32.totalorder %s14, 0
      %p132 = por %p130, %p131
      %p133 = scmp.ne.s32.totalorder %s125, %s127
      %p134 = scmp.eq.s32.totalorder %s19, 1
      %p135 = por %p133, %p134
      %p136 = scmp.ne.s32.totalorder %s127, %s128
      %p137 = scmp.eq.s32.totalorder %s19, 0
      %p138 = por %p136, %p137
      %p139 = scmp.ne.s32.totalorder %s127, %s128
      %p140 = scmp.eq.s32.totalorder %s20, 1
      %p141 = por %p139, %p140
      %p143 = scmp.ne.s32.totalorder %s128, %s142
      %p144 = scmp.eq.s32.totalorder %s20, 0
      %p145 = por %p143, %p144
      %s146 = ssub.s32 %s21, %s33
      %p147 = scmp.eq.s32.totalorder %s146, 0
      %s149 = sadd.s32 %s148, 1
      %s150 = scalar_select %p147, %s148, %s149
      %p153 = pneg %p147
      %p154 = scmp.eq.s32.totalorder %s14, 1
      %p155 = por %p153, %p154
      %p156 = scmp.ne.s32.totalorder %s148, %s151
      %p157 = scmp.eq.s32.totalorder %s14, 0
      %p158 = por %p156, %p157
      %p159 = scmp.ne.s32.totalorder %s148, %s151
      %p160 = scmp.eq.s32.totalorder %s19, 1
      %p161 = por %p159, %p160
      %p162 = scmp.ne.s32.totalorder %s151, %s152
      %p163 = scmp.eq.s32.totalorder %s19, 0
      %p164 = por %p162, %p163
      %p165 = scmp.ne.s32.totalorder %s151, %s152
      %p166 = scmp.eq.s32.totalorder %s20, 1
      %p167 = por %p165, %p166
      %p169 = scmp.ne.s32.totalorder %s152, %s168
      %p170 = scmp.eq.s32.totalorder %s20, 0
      %p171 = por %p169, %p170
      %p172 = scmp.le.s32.totalorder 1, %s14
      %p173 = scmp.lt.s32.totalorder %s14, 3
      %p174 = pnand %p172, %p173
      %p175 = pneg %p174
      // Predicated region
      $region9: #{tpu_custom_call.1} parent=5 // pred_check
        _
      $region10: #{tpu_custom_call.1} parent=5 // pred_check_branch
        %177 = sbr.rel (%p174) target = $region12
      $region11: #{tpu_custom_call.1} parent=5 // pred_region
        %s178 = ssub.s32 %s14, 1
        // Predicated region
        $region13: #{tpu_custom_call.1} parent=11 // pred_check
          %p179 = pneg %p75
        $region14: #{tpu_custom_call.1} parent=11 // pred_check_branch
          %181 = sbr.rel (%p179) target = $region16
        $region15: #{tpu_custom_call.1} parent=11 // pred_region
          _
        $region16: #{tpu_custom_call.1} parent=11 // pred_fallthru
          _
        // Predicated region
        $region17: #{tpu_custom_call.1} parent=11 // pred_check
          %p182 = pneg %p96
        $region18: #{tpu_custom_call.1} parent=11 // pred_check_branch
          %184 = sbr.rel (%p182) target = $region20
        $region19: #{tpu_custom_call.1} parent=11 // pred_region
          _
        $region20: #{tpu_custom_call.1} parent=11 // pred_fallthru
          _
        // Predicated region
        $region21: #{tpu_custom_call.1} parent=11 // pred_check
          %p185 = pneg %p117
        $region22: #{tpu_custom_call.1} parent=11 // pred_check_branch
          %187 = sbr.rel (%p185) target = $region24
        $region23: #{tpu_custom_call.1} parent=11 // pred_region
          _
        $region24: #{tpu_custom_call.1} parent=11 // pred_fallthru
          _
        // Predicated region
        $region25: #{tpu_custom_call.1} parent=11 // pred_check
          %p188 = pneg %p138
        $region26: #{tpu_custom_call.1} parent=11 // pred_check_branch
          %190 = sbr.rel (%p188) target = $region28
        $region27: #{tpu_custom_call.1} parent=11 // pred_region
          _
        $region28: #{tpu_custom_call.1} parent=11 // pred_fallthru
          _
      $region12: #{tpu_custom_call.1} parent=5 // pred_fallthru
        _
      %p191 = scmp.lt.s32.totalorder %s14, 2
      // Predicated region
      $region29: #{tpu_custom_call.1} parent=5 // pred_check
        %p192 = pneg %p191
      $region30: #{tpu_custom_call.1} parent=5 // pred_check_branch
        %194 = sbr.rel (%p192) target = $region32
      $region31: #{tpu_custom_call.1} parent=5 // pred_region
        // Predicated region
        $region33: #{tpu_custom_call.1} parent=31 // pred_check
          %p195 = pneg %p48
        $region34: #{tpu_custom_call.1} parent=31 // pred_check_branch
          %197 = sbr.rel (%p195) target = $region36
        $region35: #{tpu_custom_call.1} parent=31 // pred_region
          %s198 = sand.u32 %s38, 1
          %s199 = scalar_lea.sflag [#allocation4], %s198
          %s200 = sand.u32 %s38, 1
          %s201 = smul.addr %s200, 64
          %s202 = scalar_lea.vmem [#allocation3], %s201
          %s203 = smul.u32 2, %s22
          %s205 = ssub.s32 1024, 1024
          %206 = vsyncadd %s199, %s205
          %s207 = smul.addr %s21, 8
          %s208 = sadd.s32 %s203, %s207
          %s209 = smul.addr %s208, 128
          %s210 = scalar_lea.hbm %s0, %s209
          %s211 = sshll.u32 %s202, 4
          %s212 = int_to_ptr.vmem [resolvable:$true] %s211
          %217 = dma.hbm_to_vmem [thread:$0]  %s210, 1024, %s212, %s199, 256, 256, 16
        $region36: #{tpu_custom_call.1} parent=31 // pred_fallthru
          _
      $region32: #{tpu_custom_call.1} parent=5 // pred_fallthru
        _
      %p218 = scmp.le.s32.totalorder 1, %s14
      %p219 = scmp.lt.s32.totalorder %s14, 3
      %p220 = pnand %p218, %p219
      %p221 = pneg %p220
      // Predicated region
      $region37: #{tpu_custom_call.1} parent=5 // pred_check
        _
      $region38: #{tpu_custom_call.1} parent=5 // pred_check_branch
        %223 = sbr.rel (%p220) target = $region40
      $region39: #{tpu_custom_call.1} parent=5 // pred_region
        %s224 = ssub.s32 %s14, 1
        %s225 = sand.u32 %s41, 1
        %s226 = scalar_lea.sflag [#allocation4], %s225
        %s227 = sand.u32 %s41, 1
        %s228 = smul.addr %s227, 64
        %s229 = scalar_lea.vmem [#allocation3], %s228
        // Predicated region
        $region41: #{tpu_custom_call.1} parent=39 // pred_check
          %p230 = pneg %p54
        $region42: #{tpu_custom_call.1} parent=39 // pred_check_branch
          %232 = sbr.rel (%p230) target = $region44
        $region43: #{tpu_custom_call.1} parent=39 // pred_region
          %233 = dma.done %s226, 1024
        $region44: #{tpu_custom_call.1} parent=39 // pred_fallthru
          _
        %s234 = sand.u32 %s41, 1
        %s235 = scalar_lea.sflag [#allocation4], %s234
        %s236 = sand.u32 %s41, 1
        %s237 = smul.addr %s236, 64
        %s238 = scalar_lea.vmem [#allocation3], %s237
        %p239 = pneg %p54
        %p240 = pneg %p51
        %p241 = pneg %p75
        %p242 = pneg %p72
        %p243 = pneg %p96
        %p244 = pneg %p93
        %p245 = pneg %p117
        %p246 = pneg %p114
        %p247 = pneg %p138
        %p248 = pneg %p135
        %p249 = pneg %p164
        %p250 = pneg %p161
        %p251 = scmp.lt.s32.totalorder %s23, 1
        %s252 = scalar_select %p251, %s23, 1
        %s253 = smul.addr %s252, 4
        %s254 = smul.addr %s253, 8
        %s255 = scalar_lea.vmem %s5, %s254
        %s256 = smul.u32 2, %s24
        %p257 = scmp.lt.s32.totalorder %s23, 1
        %s258 = scalar_select %p257, %s23, 1
        %s259 = smul.addr %s258, 4
        %s260 = smul.addr %s259, 8
        %s261 = scalar_lea.vmem %s5, %s260
        %p262 = scmp.eq.s32.totalorder %s24, 0
        // Predicated region
        $region45: #{tpu_custom_call.1} parent=39 // pred_check
          %p263 = pneg %p262
        $region46: #{tpu_custom_call.1} parent=39 // pred_check_branch
          %265 = sbr.rel (%p263) target = $region48
        $region47: #{tpu_custom_call.1} parent=39 // pred_region
          %vm266 = vcmask 7168
          %267 = vst.msk [vmem:[#allocation2] sm:$0xff] %vm266, 0.0
          %268 = vst.msk [vmem:[#allocation2 + $0x8] sm:$0xff] %vm266, 0.0
          %269 = vst.msk [vmem:[#allocation2 + $0x10] sm:$0xff] %vm266, 0.0
          %270 = vst.msk [vmem:[#allocation2 + $0x18] sm:$0xff] %vm266, 0.0
        $region48: #{tpu_custom_call.1} parent=39 // pred_fallthru
          _
        %v271 = vld [vmem:[#allocation2] sm:$0xff]
        %v272 = vld [vmem:[#allocation2 + $0x8] sm:$0xff]
        %v273 = vld [vmem:[#allocation2 + $0x10] sm:$0xff]
        %v274 = vld [vmem:[#allocation2 + $0x18] sm:$0xff]
        %v275 = vld [vmem:[%s229] sm:$0xff]
        %v276 = vld [vmem:[%s229 + $0x8] sm:$0xff]
        %v277 = vld [vmem:[%s229 + $0x10] sm:$0xff]
        %v278 = vld [vmem:[%s229 + $0x18] sm:$0xff]
        %v279 = vld [vmem:[%s229 + $0x20] sm:$0xff]
        %v280 = vld [vmem:[%s229 + $0x28] sm:$0xff]
        %v281 = vld [vmem:[%s229 + $0x30] sm:$0xff]
        %v282 = vld [vmem:[%s229 + $0x38] sm:$0xff]
        %v283 = vadd.f32 %v275, %v276
        %284 = vadd.xlane.f32.xlu0 %v283
        %v285 = vpop.xlane.xlu0 %284
        %v286 = vadd.f32 %v277, %v278
        %287 = vadd.xlane.f32.xlu0 %v286
        %v288 = vpop.xlane.xlu0 %287
        %v289 = vadd.f32 %v279, %v280
        %290 = vadd.xlane.f32.xlu0 %v289
        %v291 = vpop.xlane.xlu0 %290
        %v292 = vadd.f32 %v281, %v282
        %293 = vadd.xlane.f32.xlu0 %v292
        %v294 = vpop.xlane.xlu0 %293
        %v295 = vadd.f32 %v271, %v285
        %v296 = vadd.f32 %v272, %v288
        %v297 = vadd.f32 %v273, %v291
        %v298 = vadd.f32 %v274, %v294
        %vm299 = vcmask 7168
        %300 = vst.msk [vmem:[#allocation2] sm:$0xff] %vm299, %v295
        %301 = vst.msk [vmem:[#allocation2 + $0x8] sm:$0xff] %vm299, %v296
        %302 = vst.msk [vmem:[#allocation2 + $0x10] sm:$0xff] %vm299, %v297
        %303 = vst.msk [vmem:[#allocation2 + $0x18] sm:$0xff] %vm299, %v298
        // Predicated region
        $region49: #{tpu_custom_call.1} parent=39 // pred_check
          %p304 = pneg %p262
        $region50: #{tpu_custom_call.1} parent=39 // pred_check_branch
          %306 = sbr.rel (%p304) target = $region52
        $region51: #{tpu_custom_call.1} parent=39 // pred_region
          %v307 = vld [vmem:[#allocation2] sm:$0xff]
          %v308 = vld [vmem:[#allocation2 + $0x8] sm:$0xff]
          %v309 = vld [vmem:[#allocation2 + $0x10] sm:$0xff]
          %v310 = vld [vmem:[#allocation2 + $0x18] sm:$0xff]
          %v311 = vmul.f32 %v307, 0.00390625
          %v312 = vmul.f32 %v308, 0.00390625
          %v313 = vmul.f32 %v309, 0.00390625
          %v314 = vmul.f32 %v310, 0.00390625
          %v315 = vld [vmem:[%s1] sm:$0xff]
          %v316 = vld [vmem:[%s1 + $0x8] sm:$0xff]
          %v317 = vld [vmem:[%s1 + $0x10] sm:$0xff]
          %v318 = vld [vmem:[%s1 + $0x18] sm:$0xff]
          %v319 = vld [vmem:[%s2] sm:$0x1]
          %v320 = vld [vmem:[%s3] sm:$0xf]
          %v321 = vld [vmem:[%s4] sm:$0x1]
          %326 = vset.pattern.permute.xlu0 0
          %327 = vperm.xlu0 %326, %v311
          %v328 = vpop.permute.xlu0 %327
          %329 = vset.pattern.permute.xlu0 0
          %330 = vperm.xlu0 %329, %v312
          %v331 = vpop.permute.xlu0 %330
          %332 = vset.pattern.permute.xlu0 0
          %333 = vperm.xlu0 %332, %v313
          %v334 = vpop.permute.xlu0 %333
          %335 = vset.pattern.permute.xlu0 0
          %336 = vperm.xlu0 %335, %v314
          %v337 = vpop.permute.xlu0 %336
          %v338 = vlaneseq
          %v339 = vand.u32 %v338, 127
          %v340 = vlaneseq
          %v341 = vshrl.u32 %v340, 7
          %v342 = vsub.s32 %v339, %v341
          %v343 = vrot.slane %v328, %v342
          %v344 = vadd.s32 %v339, 4294967288
          %v345 = vlaneseq
          %v346 = vshrl.u32 %v345, 7
          %v347 = vsub.s32 %v344, %v346
          %v348 = vrot.slane %v331, %v347
          %vm349 = vcmask 130112
          %v350 = vsel %vm349, %v348, %v343
          %v351 = vadd.s32 %v339, 4294967280
          %v352 = vlaneseq
          %v353 = vshrl.u32 %v352, 7
          %v354 = vsub.s32 %v351, %v353
          %v355 = vrot.slane %v334, %v354
          %vm356 = vcmask 195712
          %v357 = vsel %vm356, %v355, %v350
          %v358 = vadd.s32 %v339, 4294967272
          %v359 = vlaneseq
          %v360 = vshrl.u32 %v359, 7
          %v361 = vsub.s32 %v358, %v360
          %v362 = vrot.slane %v337, %v361
          %vm363 = vcmask 261312
          %v364 = vsel %vm363, %v362, %v357
          %vm365 = vcmask 261120
          %v366 = vsel %vm365, %v364, 0
          %368 = vmatprep.subr.mxu0 0.0
          %369 = vmatpush1.msra.mxu0 %v315
          %370 = vmatprep.subr.mxu0 0.0
          %371 = vmatpush1.msra.mxu0 %v316
          %372 = vmatprep.subr.mxu0 0.0
          %373 = vmatpush1.msra.mxu0 %v317
          %374 = vmatprep.subr.mxu0 0.0
          %375 = vmatpush1.msra.mxu0 %v318
          %376 = vmatprep.subr.mxu0 0.0
          %377 = vmatpush1.msra.mxu0 0.0
          %378 = vmatprep.subr.mxu0 0.0
          %379 = vmatpush1.msra.mxu0 0.0
          %380 = vmatprep.subr.mxu0 0.0
          %381 = vmatpush1.msra.mxu0 0.0
          %382 = vmatprep.subr.mxu0 0.0
          %383 = vmatpush1.msra.mxu0 0.0
          %384 = vmatprep.subr.mxu0 0.0
          %385 = vmatpush1.msra.mxu0 0.0
          %386 = vmatprep.subr.mxu0 0.0
          %387 = vmatpush1.msra.mxu0 0.0
          %388 = vmatprep.subr.mxu0 0.0
          %389 = vmatpush1.msra.mxu0 0.0
          %390 = vmatprep.subr.mxu0 0.0
          %391 = vmatpush1.msra.mxu0 0.0
          %392 = vmatprep.subr.mxu0 0.0
          %393 = vmatpush1.msra.mxu0 0.0
          %394 = vmatprep.subr.mxu0 0.0
          %395 = vmatpush1.msra.mxu0 0.0
          %396 = vmatprep.subr.mxu0 0.0
          %397 = vmatpush1.msra.mxu0 0.0
          %398 = vmatprep.subr.mxu0 0.0
          %399 = vmatpush1.msra.mxu0 0.0
          %400 = vmatprep.subr.mxu0 0.0
          %401 = vmatpush1.msra.mxu0 0.0
          %402 = vmatprep.subr.mxu0 0.0
          %403 = vmatpush1.msra.mxu0 0.0
          %404 = vmatprep.subr.mxu0 0.0
          %405 = vmatpush1.msra.mxu0 0.0
          %406 = vmatprep.subr.mxu0 0.0
          %407 = vmatpush1.msra.mxu0 0.0
          %408 = vmatprep.subr.mxu0 0.0
          %409 = vmatpush1.msra.mxu0 0.0
          %410 = vmatprep.subr.mxu0 0.0
          %411 = vmatpush1.msra.mxu0 0.0
          %412 = vmatprep.subr.mxu0 0.0
          %413 = vmatpush1.msra.mxu0 0.0
          %414 = vmatprep.subr.mxu0 0.0
          %415 = vmatpush1.msra.mxu0 0.0
          %416 = vmatprep.subr.mxu0 0.0
          %417 = vmatpush1.msra.mxu0 0.0
          %418 = vmatprep.subr.mxu0 0.0
          %419 = vmatpush1.msra.mxu0 0.0
          %420 = vmatprep.subr.mxu0 0.0
          %421 = vmatpush1.msra.mxu0 0.0
          %422 = vmatprep.subr.mxu0 0.0
          %423 = vmatpush1.msra.mxu0 0.0
          %424 = vmatprep.subr.mxu0 0.0
          %425 = vmatpush1.msra.mxu0 0.0
          %426 = vmatprep.subr.mxu0 0.0
          %427 = vmatpush1.msra.mxu0 0.0
          %428 = vmatprep.subr.mxu0 0.0
          %429 = vmatpush1.msra.mxu0 0.0
          %430 = vmatprep.subr.mxu0 0.0
          %431 = vmatpush1.msra.mxu0 0.0
          %432 = vmatprep.mubr.f32.mxu0 0.0
          %433 = vmatmul.mubr.f32.gmra.mrb[0].mxu0 %v366
          %v434 = vpop.f32.mrb[0].mxu0
          %v435 = vadd.f32 %v319, %v434
          %v436 = vpop.f32.mrb[0].mxu0
          %437 = vdwg.mxu0
          %v438 = vmax.f32 %v435, 0.0
          %vm439 = vcmask 31744
          %v441 = vsel %vm439, %v438, 0
          %vm443 = vcmask 1043456
          %v445 = vsel %vm443, %v320, 0
          %447 = vmatprep.subr.mxu0 0.0
          %448 = vmatpush1.msra.mxu0 %v445
          %449 = vmatprep.subr.mxu0 0.0
          %450 = vmatpush1.msra.mxu0 0.0
          %451 = vmatprep.subr.mxu0 0.0
          %452 = vmatpush1.msra.mxu0 0.0
          %453 = vmatprep.subr.mxu0 0.0
          %454 = vmatpush1.msra.mxu0 0.0
          %455 = vmatprep.subr.mxu0 0.0
          %456 = vmatpush1.msra.mxu0 0.0
          %457 = vmatprep.subr.mxu0 0.0
          %458 = vmatpush1.msra.mxu0 0.0
          %459 = vmatprep.subr.mxu0 0.0
          %460 = vmatpush1.msra.mxu0 0.0
          %461 = vmatprep.subr.mxu0 0.0
          %462 = vmatpush1.msra.mxu0 0.0
          %463 = vmatprep.subr.mxu0 0.0
          %464 = vmatpush1.msra.mxu0 0.0
          %465 = vmatprep.subr.mxu0 0.0
          %466 = vmatpush1.msra.mxu0 0.0
          %467 = vmatprep.subr.mxu0 0.0
          %468 = vmatpush1.msra.mxu0 0.0
          %469 = vmatprep.subr.mxu0 0.0
          %470 = vmatpush1.msra.mxu0 0.0
          %471 = vmatprep.subr.mxu0 0.0
          %472 = vmatpush1.msra.mxu0 0.0
          %473 = vmatprep.subr.mxu0 0.0
          %474 = vmatpush1.msra.mxu0 0.0
          %475 = vmatprep.subr.mxu0 0.0
          %476 = vmatpush1.msra.mxu0 0.0
          %477 = vmatprep.subr.mxu0 0.0
          %478 = vmatpush1.msra.mxu0 0.0
          %479 = vmatprep.subr.mxu0 0.0
          %480 = vmatpush1.msra.mxu0 0.0
          %481 = vmatprep.subr.mxu0 0.0
          %482 = vmatpush1.msra.mxu0 0.0
          %483 = vmatprep.subr.mxu0 0.0
          %484 = vmatpush1.msra.mxu0 0.0
          %485 = vmatprep.subr.mxu0 0.0
          %486 = vmatpush1.msra.mxu0 0.0
          %487 = vmatprep.subr.mxu0 0.0
          %488 = vmatpush1.msra.mxu0 0.0
          %489 = vmatprep.subr.mxu0 0.0
          %490 = vmatpush1.msra.mxu0 0.0
          %491 = vmatprep.subr.mxu0 0.0
          %492 = vmatpush1.msra.mxu0 0.0
          %493 = vmatprep.subr.mxu0 0.0
          %494 = vmatpush1.msra.mxu0 0.0
          %495 = vmatprep.subr.mxu0 0.0
          %496 = vmatpush1.msra.mxu0 0.0
          %497 = vmatprep.subr.mxu0 0.0
          %498 = vmatpush1.msra.mxu0 0.0
          %499 = vmatprep.subr.mxu0 0.0
          %500 = vmatpush1.msra.mxu0 0.0
          %501 = vmatprep.subr.mxu0 0.0
          %502 = vmatpush1.msra.mxu0 0.0
          %503 = vmatprep.subr.mxu0 0.0
          %504 = vmatpush1.msra.mxu0 0.0
          %505 = vmatprep.subr.mxu0 0.0
          %506 = vmatpush1.msra.mxu0 0.0
          %507 = vmatprep.subr.mxu0 0.0
          %508 = vmatpush1.msra.mxu0 0.0
          %509 = vmatprep.subr.mxu0 0.0
          %510 = vmatpush1.msra.mxu0 0.0
          %511 = vmatprep.mubr.f32.mxu0 0.0
          %512 = vmatmul.mubr.f32.gmra.mrb[0].mxu0 %v441
          %v513 = vpop.f32.mrb[0].mxu0
          %v514 = vadd.f32 %v321, %v513
          %v515 = vpop.f32.mrb[0].mxu0
          %516 = vdwg.mxu0
          %v517 = vxor.u32 %v514, 2147483648
          %v518 = vmul.f32 %v517, 1.442695
          %v519 = vpow.pop %v518
          %v520 = vadd.f32 %v519, 1.0
          %v521 = vrcp.pop %v520
          %v522 = vmul.f32 1.0, %v521
          %v523 = vlaneseq
          %v524 = vshrl.u32 %v523, 7
          %v525 = vsub.s32 0, %v524
          %v526 = vrot.slane %v522, %v525
          %528 = vbcast.lane.b32.xlu0 %v526, 256
          %v529 = vpop.permute.xlu0 %528
          %s531 = sor.u32 256, 8
          %532 = vbcast.lane.b32.xlu0 %v526, %s531
          %v533 = vpop.permute.xlu0 %532
          %s535 = sor.u32 256, 16
          %536 = vbcast.lane.b32.xlu0 %v526, %s535
          %v537 = vpop.permute.xlu0 %536
          %s539 = sor.u32 256, 24
          %540 = vbcast.lane.b32.xlu0 %v526, %s539
          %v541 = vpop.permute.xlu0 %540
          %542 = vst.msk [vmem:[%s261] sm:$0xff] %vm299, %v529
          %543 = vst.msk [vmem:[%s261 + $0x8] sm:$0xff] %vm299, %v533
          %544 = vst.msk [vmem:[%s261 + $0x10] sm:$0xff] %vm299, %v537
          %545 = vst.msk [vmem:[%s261 + $0x18] sm:$0xff] %vm299, %v541
        $region52: #{tpu_custom_call.1} parent=39 // pred_fallthru
          _
        %p546 = scmp.lt.s32.totalorder %s23, 1
        %s547 = scalar_select %p546, %s23, 1
        %s548 = smul.addr %s547, 4
        %s549 = smul.addr %s548, 8
        %s550 = scalar_lea.vmem %s5, %s549
        // Predicated region
        $region53: #{tpu_custom_call.1} parent=39 // pred_check
          %p551 = pneg %p161
        $region54: #{tpu_custom_call.1} parent=39 // pred_check_branch
          %553 = sbr.rel (%p551) target = $region56
        $region55: #{tpu_custom_call.1} parent=39 // pred_region
          _
        $region56: #{tpu_custom_call.1} parent=39 // pred_fallthru
          _
      $region40: #{tpu_custom_call.1} parent=5 // pred_fallthru
        _
      %p554 = scmp.le.s32.totalorder 2, %s14
      // Predicated region
      $region57: #{tpu_custom_call.1} parent=5 // pred_check
        %p555 = pneg %p554
      $region58: #{tpu_custom_call.1} parent=5 // pred_check_branch
        %557 = sbr.rel (%p555) target = $region60
      $region59: #{tpu_custom_call.1} parent=5 // pred_region
        %s558 = ssub.s32 %s14, 2
        // Predicated region
        $region61: #{tpu_custom_call.1} parent=59 // pred_check
          %p559 = pneg %p167
        $region62: #{tpu_custom_call.1} parent=59 // pred_check_branch
          %561 = sbr.rel (%p559) target = $region64
        $region63: #{tpu_custom_call.1} parent=59 // pred_region
          %p562 = scmp.lt.s32.totalorder %s25, 1
          %s563 = scalar_select %p562, %s25, 1
          %s564 = smul.addr %s563, 4
          %s565 = smul.addr %s564, 8
          %s566 = scalar_lea.vmem %s5, %s565
        $region64: #{tpu_custom_call.1} parent=59 // pred_fallthru
          _
      $region60: #{tpu_custom_call.1} parent=5 // pred_fallthru
        _
    $region6: #{tpu_custom_call.1} parent=1 // loop_footer
      %s18 = sadd.s32 1, %s14
    $region7: #{tpu_custom_call.1} parent=1 // loop_footer_branch
      %13 = sbr.rel target = $region3
    $region8: #{tpu_custom_call.1} parent=1 // loop_exit
      _
    %567 = vsyncpa [#allocation4], 1
    %s568 = scalar_lea.sflag [#allocation4], 1
    %569 = vsyncpa %s568, 1

</llo_original>
